<compile_context>
chip_gen: v7x
topology: tpu7x:2x2x1
jax: 0.10.0
libtpu: 0.0.40
codegen_flags: <defaults>
</compile_context>

<pallas_src>
import functools

import jax
import jax.numpy as jnp
from jax.experimental import pallas as pl
from jax.experimental.pallas import tpu as pltpu

LANES = 128                        # TPU lane width
FEATS = 8                          # input features per sample
SLOT = 8                           # per-sample slot width inside a 128-lane row
SAMPLES_PER_ROW = LANES // SLOT    # 16 samples per packed row
OUT_LANES = SAMPLES_PER_ROW        # 16 outputs per packed row (1 per sample)
CHUNK_ROWS = 512                   # inner-loop chunk (8192 samples): bounds VMEM temps
WB_ROWS = 392                      # 3*128 weight rows + 3 bias rows, padded to mult of 8


def _round_up(n: int, m: int) -> int:
    return ((n + m - 1) // m) * m


def _pack_params(params):
    """Pack the 6 torch-layout tensors into one (392, 128) f32 block.

    rows   0:128  block-diag of 16 copies of W1^T, each padded to (8, 8)
    rows 128:256  block-diag of 16 copies of W2^T, each padded to (8, 8)
    rows 256:384  block-diag of 16 copies of W3^T as (8, 1) -> cols 0:16
    row  384      b1 padded to 8 slots and tiled x16 (128 lanes)
    row  385      b2 padded to 8 slots and tiled x16
    row  386      b3 tiled x16 (lanes 0:16)
    """
    w1 = params["w1"].astype(jnp.float32)   # (6, 8)
    w2 = params["w2"].astype(jnp.float32)   # (4, 6)
    w3 = params["w3"].astype(jnp.float32)   # (1, 4)
    b1 = params["b1"].astype(jnp.float32)   # (6,)
    b2 = params["b2"].astype(jnp.float32)   # (4,)
    b3 = params["b3"].astype(jnp.float32)   # (1,)

    eye = jnp.eye(SAMPLES_PER_ROW, dtype=jnp.float32)

    def blockdiag_wt(w, out_pad):
        # w is (out, in) torch layout; build per-sample (SLOT, out_pad) = padded w.T,
        # then a 16-sample block-diagonal via kron.
        wt = jnp.zeros((SLOT, out_pad), jnp.float32)
        wt = wt.at[: w.shape[1], : w.shape[0]].set(w.T)
        return jnp.kron(eye, wt)

    def tiled_bias(b):
        return jnp.tile(jnp.pad(b, (0, SLOT - b.shape[0])), SAMPLES_PER_ROW)

    wb = jnp.zeros((WB_ROWS, LANES), jnp.float32)
    wb = wb.at[0:128, :].set(blockdiag_wt(w1, SLOT))              # (128, 128)
    wb = wb.at[128:256, :].set(blockdiag_wt(w2, SLOT))            # (128, 128)
    wb = wb.at[256:384, :OUT_LANES].set(blockdiag_wt(w3, 1))      # (128, 16)
    wb = wb.at[384, :].set(tiled_bias(b1))
    wb = wb.at[385, :].set(tiled_bias(b2))
    wb = wb.at[386, :OUT_LANES].set(jnp.tile(b3, SAMPLES_PER_ROW))
    return wb


def _make_kernel(chunk: int, n_chunks: int):
    def kernel(wb_ref, x_ref, o_ref):
        # wb_ref: (392, 128) packed params, resident in VMEM across the grid.
        # x_ref:  (tile_rows, 128) packed inputs (16 samples per row).
        # o_ref:  (tile_rows, 16)  packed outputs (1 result per sample).
        @pl.loop(0, n_chunks)
        def _(c):
            r0 = pl.multiple_of(c * chunk, chunk)
            xc = x_ref[pl.ds(r0, chunk), :]                              # (chunk, 128)
            h = jnp.tanh(
                jnp.dot(xc, wb_ref[0:128, :],
                        preferred_element_type=jnp.float32)
                + wb_ref[384:385, :])                                    # (chunk, 128)
            h = jnp.tanh(
                jnp.dot(h, wb_ref[128:256, :],
                        preferred_element_type=jnp.float32)
                + wb_ref[385:386, :])                                    # (chunk, 128)
            o = jnp.tanh(
                jnp.dot(h, wb_ref[256:384, :],
                        preferred_element_type=jnp.float32)
                + wb_ref[386:387, :])                                    # (chunk, 128); cols >= 16 are exactly 0
            o_ref[pl.ds(r0, chunk), :] = o[:, :OUT_LANES]                # (chunk, 16)

    return kernel


def _choose_tile_rows(n_rows: int, tile_rows: int) -> int:
    """Rows per grid step: multiple of 8, multiple of CHUNK_ROWS when larger,
    and >= 2 grid steps whenever the batch allows it (v7x megacore)."""
    t = max(8, min(tile_rows, n_rows))
    if n_rows >= 16:
        t = min(t, _round_up(n_rows // 2, 8))
    if t > CHUNK_ROWS:
        t = (t // CHUNK_ROWS) * CHUNK_ROWS
    return t


@functools.partial(jax.jit, static_argnames=("tile_rows",))
def net_forward(x, params, *, tile_rows: int = 4096):
    """x: (B, 8) float32.  params use PyTorch layout: w (out, in), b (out,)."""
    B = x.shape[0]
    x = x.astype(jnp.float32)

    # Pad the batch to a multiple of 128 samples (= 8 packed rows).  This is a
    # no-op (zero extra HBM traffic) whenever B % 128 == 0.
    Bp = _round_up(B, LANES)
    if Bp != B:
        x = jnp.pad(x, ((0, Bp - B), (0, 0)))

    n_rows = Bp // SAMPLES_PER_ROW
    xp = x.reshape(n_rows, LANES)          # free reshape: 16 samples per 128-lane row

    wb = _pack_params(params)              # (392, 128) packed weights + biases (tiny)

    tile_r = _choose_tile_rows(n_rows, tile_rows)
    chunk = min(CHUNK_ROWS, tile_r)
    assert tile_r % chunk == 0
    n_chunks = tile_r // chunk
    grid = (pl.cdiv(n_rows, tile_r),)

    out = pl.pallas_call(
        _make_kernel(chunk, n_chunks),
        out_shape=jax.ShapeDtypeStruct((n_rows, OUT_LANES), jnp.float32),
        grid=grid,
        in_specs=[
            pl.BlockSpec((WB_ROWS, LANES), lambda i: (0, 0)),    # packed params, resident
            pl.BlockSpec((tile_r, LANES), lambda i: (i, 0)),     # x tile, double-buffered
        ],
        out_specs=pl.BlockSpec((tile_r, OUT_LANES), lambda i: (i, 0)),
        compiler_params=pltpu.CompilerParams(
            dimension_semantics=("parallel",),
            vmem_limit_bytes=32 * 1024 * 1024,
        ),
    )(wb, xp)

    y = out.reshape(Bp, 1)                 # free reshape back to one row per sample
    return y if Bp == B else y[:B]


def init_params(key):
    """Deterministic init mimicking nn.Linear's uniform(-1/sqrt(in), 1/sqrt(in))."""
    def linear(key, fan_in, fan_out):
        kw, kb = jax.random.split(key)
        bound = 1.0 / jnp.sqrt(jnp.float32(fan_in))
        w = jax.random.uniform(kw, (fan_out, fan_in), jnp.float32, -bound, bound)
        b = jax.random.uniform(kb, (fan_out,), jnp.float32, -bound, bound)
        return w, b

    k1, k2, k3 = jax.random.split(key, 3)
    w1, b1 = linear(k1, 8, 6)
    w2, b2 = linear(k2, 6, 4)
    w3, b3 = linear(k3, 4, 1)
    return {"w1": w1, "b1": b1, "w2": w2, "b2": b2, "w3": w3, "b3": b3}


def _reference(x, p):
    h = jnp.tanh(x @ p["w1"].T + p["b1"])
    h = jnp.tanh(h @ p["w2"].T + p["b2"])
    h = jnp.tanh(h @ p["w3"].T + p["b3"])
    return h


if __name__ == "__main__":
    key = jax.random.PRNGKey(0)
    kx, kp = jax.random.split(key)
    params = init_params(kp)

    # Small deterministic checks: B=16 (pad path), B=100 (pad + output slice),
    # B=512 (zero-copy path, 2 grid tiles).
    for batch in (16, 100, 512):
        xb = jax.random.normal(jax.random.fold_in(kx, batch), (batch, FEATS),
                               dtype=jnp.float32)
        out = jax.block_until_ready(net_forward(xb, params))
        ref = _reference(xb, params)
        assert out.shape == (batch, 1), out.shape
        # 2e-3 tolerance covers TPU default (bf16-pass) matmul precision on
        # either side; use precision=HIGHEST in the dots for ~1e-6 agreement.
        assert jnp.allclose(out, ref, atol=2e-3, rtol=2e-3), f"mismatch at B={batch}"

    print("KERNEL_OK")
</pallas_src>

<mosaic_0001>
module attributes {stable_mosaic.version = 11 : i64} {
  func.func @kernel(%arg0: i32, %arg1: memref<392x128xf32, #tpu.memory_space<vmem>>, %arg2: memref<8x128xf32, #tpu.memory_space<vmem>>, %arg3: memref<8x16xf32, #tpu.memory_space<vmem>>) attributes {dimension_semantics = [#tpu.dimension_semantics<parallel>], iteration_bounds = array<i64: 1>, scalar_prefetch = 0 : i64, scratch_operands = 0 : i64, tpu.core_type = #tpu.core_type<tc>, window_params = [{pipeline_mode = #tpu.pipeline_mode<synchronous>, transform_indices = @transform_0, window_bounds = array<i64: 392, 128>}, {transform_indices = @transform_1, window_bounds = array<i64: 8, 128>}, {transform_indices = @transform_2, window_bounds = array<i64: 8, 16>}]} {
    %c0_i32 = arith.constant 0 : i32
    %c1_i32 = arith.constant 1 : i32
    %0 = arith.muli %c0_i32, %c1_i32 : i32
    %c0_i32_0 = arith.constant 0 : i32
    %1 = arith.addi %c0_i32_0, %0 : i32
    %c8_i32 = arith.constant 8 : i32
    %2 = arith.muli %1, %c8_i32 : i32
    %3 = tpu.assume_multiple %2, 8 : i32
    %4 = arith.index_cast %3 : i32 to index
    %c0 = arith.constant 0 : index
    %5 = vector.load %arg2[%4, %c0] : memref<8x128xf32, #tpu.memory_space<vmem>>, vector<8x128xf32>
    %c0_1 = arith.constant 0 : index
    %c0_2 = arith.constant 0 : index
    %6 = vector.load %arg1[%c0_1, %c0_2] : memref<392x128xf32, #tpu.memory_space<vmem>>, vector<128x128xf32>
    %cst = arith.constant dense<0.000000e+00> : vector<8x128xf32>
    %7 = tpu.matmul %5, %6, %cst {dimension_numbers = #tpu.dot_dimension_numbers<[1], [0], [0], [1], [0, 0, 1, 1], [], []>} : vector<8x128xf32>, vector<128x128xf32>, vector<8x128xf32> -> vector<8x128xf32>
    %c384 = arith.constant 384 : index
    %c0_3 = arith.constant 0 : index
    %8 = vector.load %arg1[%c384, %c0_3] : memref<392x128xf32, #tpu.memory_space<vmem>>, vector<1x128xf32>
    %9 = vector.broadcast %8 : vector<1x128xf32> to vector<8x128xf32>
    %10 = arith.addf %7, %9 : vector<8x128xf32>
    %11 = math.tanh %10 : vector<8x128xf32>
    %c128 = arith.constant 128 : index
    %c0_4 = arith.constant 0 : index
    %12 = vector.load %arg1[%c128, %c0_4] : memref<392x128xf32, #tpu.memory_space<vmem>>, vector<128x128xf32>
    %cst_5 = arith.constant dense<0.000000e+00> : vector<8x128xf32>
    %13 = tpu.matmul %11, %12, %cst_5 {dimension_numbers = #tpu.dot_dimension_numbers<[1], [0], [0], [1], [0, 0, 1, 1], [], []>} : vector<8x128xf32>, vector<128x128xf32>, vector<8x128xf32> -> vector<8x128xf32>
    %c385 = arith.constant 385 : index
    %c0_6 = arith.constant 0 : index
    %14 = vector.load %arg1[%c385, %c0_6] : memref<392x128xf32, #tpu.memory_space<vmem>>, vector<1x128xf32>
    %15 = vector.broadcast %14 : vector<1x128xf32> to vector<8x128xf32>
    %16 = arith.addf %13, %15 : vector<8x128xf32>
    %17 = math.tanh %16 : vector<8x128xf32>
    %c256 = arith.constant 256 : index
    %c0_7 = arith.constant 0 : index
    %18 = vector.load %arg1[%c256, %c0_7] : memref<392x128xf32, #tpu.memory_space<vmem>>, vector<128x128xf32>
    %cst_8 = arith.constant dense<0.000000e+00> : vector<8x128xf32>
    %19 = tpu.matmul %17, %18, %cst_8 {dimension_numbers = #tpu.dot_dimension_numbers<[1], [0], [0], [1], [0, 0, 1, 1], [], []>} : vector<8x128xf32>, vector<128x128xf32>, vector<8x128xf32> -> vector<8x128xf32>
    %c386 = arith.constant 386 : index
    %c0_9 = arith.constant 0 : index
    %20 = vector.load %arg1[%c386, %c0_9] : memref<392x128xf32, #tpu.memory_space<vmem>>, vector<1x128xf32>
    %21 = vector.broadcast %20 : vector<1x128xf32> to vector<8x128xf32>
    %22 = arith.addf %19, %21 : vector<8x128xf32>
    %23 = math.tanh %22 : vector<8x128xf32>
    %24 = vector.extract_strided_slice %23 {offsets = [0, 0], sizes = [8, 16], strides = [1, 1]} : vector<8x128xf32> to vector<8x16xf32>
    %25 = arith.index_cast %3 : i32 to index
    %c0_10 = arith.constant 0 : index
    %26 = vector.load %arg3[%25, %c0_10] : memref<8x16xf32, #tpu.memory_space<vmem>>, vector<8x16xf32>
    tpu.vector_store %arg3[%25, %c0_10], %24 {strides = array<i32>} : memref<8x16xf32, #tpu.memory_space<vmem>>, vector<8x16xf32>,
    %c1_i32_11 = arith.constant 1 : i32
    return
  }
  func.func @transform_0(%arg0: i32) -> (i32, i32) {
    %c0_i32 = arith.constant 0 : i32
    %c0_i32_0 = arith.constant 0 : i32
    %c0_i32_1 = arith.constant 0 : i32
    return %c0_i32, %c0_i32_0 : i32, i32
  }
  func.func @transform_1(%arg0: i32) -> (i32, i32) {
    %c0_i32 = arith.constant 0 : i32
    %c0_i32_0 = arith.constant 0 : i32
    return %arg0, %c0_i32 : i32, i32
  }
  func.func @transform_2(%arg0: i32) -> (i32, i32) {
    %c0_i32 = arith.constant 0 : i32
    %c0_i32_0 = arith.constant 0 : i32
    return %arg0, %c0_i32 : i32, i32
  }
}

</mosaic_0001>

<llo_original>
// kernel: net_forward.1
$region0: #{net_forward.1}
  #allocation0 [shape = 'u32[]', space=smem, size = 0x4, offset = 0x4, fixed_abs, tag = 'smem constant byte address 0x4 - core index']
  #allocation1 [shape = 'u32[144,128]{1,0:T(1,128)}', space=vmem, size = 0x12000, scoped, tag = 'internal scratch']
  %s0 = inlined_call_operand.vmem [shape: f32[392,128], index: 0, kind: input, shape index: {}]
  %s1 = inlined_call_operand.vmem [shape: f32[8,128], index: 1, kind: input, shape index: {}]
  %s2 = inlined_call_operand.vmem [shape: f32[8,16], index: 2, kind: output, shape index: {}]
  %s3 = sld [smem:[#allocation0]]
  $region18: #{net_forward.1} parent=0
    _
  %s5 = ssub.s32 1, %s3
  %s6 = scalar_select 0, %s5, %s3
  // Predicated region
  $region2: #{net_forward.1} parent=0 // pred_check
    _
  $region3: #{net_forward.1} parent=0 // pred_check_branch
    %8 = sbr.rel (0) target = $region5
  $region4: #{net_forward.1} parent=0 // pred_region
    _
  $region5: #{net_forward.1} parent=0 // pred_fallthru
    _
  // Predicated region
  $region6: #{net_forward.1} parent=0 // pred_check
    _
  $region7: #{net_forward.1} parent=0 // pred_check_branch
    %10 = sbr.rel (0) target = $region9
  $region8: #{net_forward.1} parent=0 // pred_region
    _
  $region9: #{net_forward.1} parent=0 // pred_fallthru
    _
  %v11 = vld [vmem:[%s1] sm:$0xff]
  %v12 = vld [vmem:[%s0] sm:$0xff]
  %v13 = vld [vmem:[%s0 + $0x8] sm:$0xff]
  %v14 = vld [vmem:[%s0 + $0x10] sm:$0xff]
  %v15 = vld [vmem:[%s0 + $0x18] sm:$0xff]
  %v16 = vld [vmem:[%s0 + $0x20] sm:$0xff]
  %v17 = vld [vmem:[%s0 + $0x28] sm:$0xff]
  %v18 = vld [vmem:[%s0 + $0x30] sm:$0xff]
  %v19 = vld [vmem:[%s0 + $0x38] sm:$0xff]
  %v20 = vld [vmem:[%s0 + $0x40] sm:$0xff]
  %v21 = vld [vmem:[%s0 + $0x48] sm:$0xff]
  %v22 = vld [vmem:[%s0 + $0x50] sm:$0xff]
  %v23 = vld [vmem:[%s0 + $0x58] sm:$0xff]
  %v24 = vld [vmem:[%s0 + $0x60] sm:$0xff]
  %v25 = vld [vmem:[%s0 + $0x68] sm:$0xff]
  %v26 = vld [vmem:[%s0 + $0x70] sm:$0xff]
  %v27 = vld [vmem:[%s0 + $0x78] sm:$0xff]
  %v28 = vld [vmem:[%s0 + $0x180] sm:$0x1]
  %v29 = vlaneseq
  %v30 = vshrl.u32 %v29, 7
  %v31 = vsub.s32 0, %v30
  %v32 = vrot.slane %v28, %v31
  %33 = vmatprep.subr.mxu0 0.0
  %34 = vmatpush1.msra.mxu0 %v12
  %35 = vmatprep.subr.mxu0 0.0
  %36 = vmatpush1.msra.mxu0 %v13
  %37 = vmatprep.subr.mxu0 0.0
  %38 = vmatpush1.msra.mxu0 %v14
  %39 = vmatprep.subr.mxu0 0.0
  %40 = vmatpush1.msra.mxu0 %v15
  %41 = vmatprep.subr.mxu0 0.0
  %42 = vmatpush1.msra.mxu0 %v16
  %43 = vmatprep.subr.mxu0 0.0
  %44 = vmatpush1.msra.mxu0 %v17
  %45 = vmatprep.subr.mxu0 0.0
  %46 = vmatpush1.msra.mxu0 %v18
  %47 = vmatprep.subr.mxu0 0.0
  %48 = vmatpush1.msra.mxu0 %v19
  %49 = vmatprep.subr.mxu0 0.0
  %50 = vmatpush1.msra.mxu0 %v20
  %51 = vmatprep.subr.mxu0 0.0
  %52 = vmatpush1.msra.mxu0 %v21
  %53 = vmatprep.subr.mxu0 0.0
  %54 = vmatpush1.msra.mxu0 %v22
  %55 = vmatprep.subr.mxu0 0.0
  %56 = vmatpush1.msra.mxu0 %v23
  %57 = vmatprep.subr.mxu0 0.0
  %58 = vmatpush1.msra.mxu0 %v24
  %59 = vmatprep.subr.mxu0 0.0
  %60 = vmatpush1.msra.mxu0 %v25
  %61 = vmatprep.subr.mxu0 0.0
  %62 = vmatpush1.msra.mxu0 %v26
  %63 = vmatprep.subr.mxu0 0.0
  %64 = vmatpush1.msra.mxu0 %v27
  %65 = vmatprep.subr.mxu0 0.0
  %66 = vmatpush1.msra.mxu0 0.0
  %67 = vmatprep.subr.mxu0 0.0
  %68 = vmatpush1.msra.mxu0 0.0
  %69 = vmatprep.subr.mxu0 0.0
  %70 = vmatpush1.msra.mxu0 0.0
  %71 = vmatprep.subr.mxu0 0.0
  %72 = vmatpush1.msra.mxu0 0.0
  %73 = vmatprep.subr.mxu0 0.0
  %74 = vmatpush1.msra.mxu0 0.0
  %75 = vmatprep.subr.mxu0 0.0
  %76 = vmatpush1.msra.mxu0 0.0
  %77 = vmatprep.subr.mxu0 0.0
  %78 = vmatpush1.msra.mxu0 0.0
  %79 = vmatprep.subr.mxu0 0.0
  %80 = vmatpush1.msra.mxu0 0.0
  %81 = vmatprep.subr.mxu0 0.0
  %82 = vmatpush1.msra.mxu0 0.0
  %83 = vmatprep.subr.mxu0 0.0
  %84 = vmatpush1.msra.mxu0 0.0
  %85 = vmatprep.subr.mxu0 0.0
  %86 = vmatpush1.msra.mxu0 0.0
  %87 = vmatprep.subr.mxu0 0.0
  %88 = vmatpush1.msra.mxu0 0.0
  %89 = vmatprep.subr.mxu0 0.0
  %90 = vmatpush1.msra.mxu0 0.0
  %91 = vmatprep.subr.mxu0 0.0
  %92 = vmatpush1.msra.mxu0 0.0
  %93 = vmatprep.subr.mxu0 0.0
  %94 = vmatpush1.msra.mxu0 0.0
  %95 = vmatprep.subr.mxu0 0.0
  %96 = vmatpush1.msra.mxu0 0.0
  %97 = vmatprep.mubr.f32.mxu0 0.0
  %98 = vmatmul.mubr.f32.gmra.mrb[0].mxu0 %v11
  %v99 = vpop.f32.mrb[0].mxu0
  %v100 = vadd.f32 %v32, %v99
  %v101 = vpop.f32.mrb[0].mxu0
  %102 = vdwg.mxu0
  %v103 = vtanh.pop %v100
  %v104 = vld [vmem:[%s0 + $0x80] sm:$0xff]
  %v105 = vld [vmem:[%s0 + $0x88] sm:$0xff]
  %v106 = vld [vmem:[%s0 + $0x90] sm:$0xff]
  %v107 = vld [vmem:[%s0 + $0x98] sm:$0xff]
  %v108 = vld [vmem:[%s0 + $0xa0] sm:$0xff]
  %v109 = vld [vmem:[%s0 + $0xa8] sm:$0xff]
  %v110 = vld [vmem:[%s0 + $0xb0] sm:$0xff]
  %v111 = vld [vmem:[%s0 + $0xb8] sm:$0xff]
  %v112 = vld [vmem:[%s0 + $0xc0] sm:$0xff]
  %v113 = vld [vmem:[%s0 + $0xc8] sm:$0xff]
  %v114 = vld [vmem:[%s0 + $0xd0] sm:$0xff]
  %v115 = vld [vmem:[%s0 + $0xd8] sm:$0xff]
  %v116 = vld [vmem:[%s0 + $0xe0] sm:$0xff]
  %v117 = vld [vmem:[%s0 + $0xe8] sm:$0xff]
  %v118 = vld [vmem:[%s0 + $0xf0] sm:$0xff]
  %v119 = vld [vmem:[%s0 + $0xf8] sm:$0xff]
  %v120 = vld [vmem:[%s0 + $0x181] sm:$0x1]
  %v121 = vlaneseq
  %v122 = vshrl.u32 %v121, 7
  %v123 = vsub.s32 0, %v122
  %v124 = vrot.slane %v120, %v123
  %125 = vmatprep.subr.mxu0 0.0
  %126 = vmatpush1.msra.mxu0 %v104
  %127 = vmatprep.subr.mxu0 0.0
  %128 = vmatpush1.msra.mxu0 %v105
  %129 = vmatprep.subr.mxu0 0.0
  %130 = vmatpush1.msra.mxu0 %v106
  %131 = vmatprep.subr.mxu0 0.0
  %132 = vmatpush1.msra.mxu0 %v107
  %133 = vmatprep.subr.mxu0 0.0
  %134 = vmatpush1.msra.mxu0 %v108
  %135 = vmatprep.subr.mxu0 0.0
  %136 = vmatpush1.msra.mxu0 %v109
  %137 = vmatprep.subr.mxu0 0.0
  %138 = vmatpush1.msra.mxu0 %v110
  %139 = vmatprep.subr.mxu0 0.0
  %140 = vmatpush1.msra.mxu0 %v111
  %141 = vmatprep.subr.mxu0 0.0
  %142 = vmatpush1.msra.mxu0 %v112
  %143 = vmatprep.subr.mxu0 0.0
  %144 = vmatpush1.msra.mxu0 %v113
  %145 = vmatprep.subr.mxu0 0.0
  %146 = vmatpush1.msra.mxu0 %v114
  %147 = vmatprep.subr.mxu0 0.0
  %148 = vmatpush1.msra.mxu0 %v115
  %149 = vmatprep.subr.mxu0 0.0
  %150 = vmatpush1.msra.mxu0 %v116
  %151 = vmatprep.subr.mxu0 0.0
  %152 = vmatpush1.msra.mxu0 %v117
  %153 = vmatprep.subr.mxu0 0.0
  %154 = vmatpush1.msra.mxu0 %v118
  %155 = vmatprep.subr.mxu0 0.0
  %156 = vmatpush1.msra.mxu0 %v119
  %157 = vmatprep.subr.mxu0 0.0
  %158 = vmatpush1.msra.mxu0 0.0
  %159 = vmatprep.subr.mxu0 0.0
  %160 = vmatpush1.msra.mxu0 0.0
  %161 = vmatprep.subr.mxu0 0.0
  %162 = vmatpush1.msra.mxu0 0.0
  %163 = vmatprep.subr.mxu0 0.0
  %164 = vmatpush1.msra.mxu0 0.0
  %165 = vmatprep.subr.mxu0 0.0
  %166 = vmatpush1.msra.mxu0 0.0
  %167 = vmatprep.subr.mxu0 0.0
  %168 = vmatpush1.msra.mxu0 0.0
  %169 = vmatprep.subr.mxu0 0.0
  %170 = vmatpush1.msra.mxu0 0.0
  %171 = vmatprep.subr.mxu0 0.0
  %172 = vmatpush1.msra.mxu0 0.0
  %173 = vmatprep.subr.mxu0 0.0
  %174 = vmatpush1.msra.mxu0 0.0
  %175 = vmatprep.subr.mxu0 0.0
  %176 = vmatpush1.msra.mxu0 0.0
  %177 = vmatprep.subr.mxu0 0.0
  %178 = vmatpush1.msra.mxu0 0.0
  %179 = vmatprep.subr.mxu0 0.0
  %180 = vmatpush1.msra.mxu0 0.0
  %181 = vmatprep.subr.mxu0 0.0
  %182 = vmatpush1.msra.mxu0 0.0
  %183 = vmatprep.subr.mxu0 0.0
  %184 = vmatpush1.msra.mxu0 0.0
  %185 = vmatprep.subr.mxu0 0.0
  %186 = vmatpush1.msra.mxu0 0.0
  %187 = vmatprep.subr.mxu0 0.0
  %188 = vmatpush1.msra.mxu0 0.0
  %189 = vmatprep.mubr.f32.mxu0 0.0
  %190 = vmatmul.mubr.f32.gmra.mrb[0].mxu0 %v103
  %v191 = vpop.f32.mrb[0].mxu0
  %v192 = vadd.f32 %v124, %v191
  %v193 = vpop.f32.mrb[0].mxu0
  %194 = vdwg.mxu0
  %v195 = vtanh.pop %v192
  %v196 = vld [vmem:[%s0 + $0x100] sm:$0xff]
  %v197 = vld [vmem:[%s0 + $0x108] sm:$0xff]
  %v198 = vld [vmem:[%s0 + $0x110] sm:$0xff]
  %v199 = vld [vmem:[%s0 + $0x118] sm:$0xff]
  %v200 = vld [vmem:[%s0 + $0x120] sm:$0xff]
  %v201 = vld [vmem:[%s0 + $0x128] sm:$0xff]
  %v202 = vld [vmem:[%s0 + $0x130] sm:$0xff]
  %v203 = vld [vmem:[%s0 + $0x138] sm:$0xff]
  %v204 = vld [vmem:[%s0 + $0x140] sm:$0xff]
  %v205 = vld [vmem:[%s0 + $0x148] sm:$0xff]
  %v206 = vld [vmem:[%s0 + $0x150] sm:$0xff]
  %v207 = vld [vmem:[%s0 + $0x158] sm:$0xff]
  %v208 = vld [vmem:[%s0 + $0x160] sm:$0xff]
  %v209 = vld [vmem:[%s0 + $0x168] sm:$0xff]
  %v210 = vld [vmem:[%s0 + $0x170] sm:$0xff]
  %v211 = vld [vmem:[%s0 + $0x178] sm:$0xff]
  %v212 = vld [vmem:[%s0 + $0x182] sm:$0x1]
  %v213 = vlaneseq
  %v214 = vshrl.u32 %v213, 7
  %v215 = vsub.s32 0, %v214
  %v216 = vrot.slane %v212, %v215
  %217 = vmatprep.subr.mxu0 0.0
  %218 = vmatpush1.msra.mxu0 %v196
  %219 = vmatprep.subr.mxu0 0.0
  %220 = vmatpush1.msra.mxu0 %v197
  %221 = vmatprep.subr.mxu0 0.0
  %222 = vmatpush1.msra.mxu0 %v198
  %223 = vmatprep.subr.mxu0 0.0
  %224 = vmatpush1.msra.mxu0 %v199
  %225 = vmatprep.subr.mxu0 0.0
  %226 = vmatpush1.msra.mxu0 %v200
  %227 = vmatprep.subr.mxu0 0.0
  %228 = vmatpush1.msra.mxu0 %v201
  %229 = vmatprep.subr.mxu0 0.0
  %230 = vmatpush1.msra.mxu0 %v202
  %231 = vmatprep.subr.mxu0 0.0
  %232 = vmatpush1.msra.mxu0 %v203
  %233 = vmatprep.subr.mxu0 0.0
  %234 = vmatpush1.msra.mxu0 %v204
  %235 = vmatprep.subr.mxu0 0.0
  %236 = vmatpush1.msra.mxu0 %v205
  %237 = vmatprep.subr.mxu0 0.0
  %238 = vmatpush1.msra.mxu0 %v206
  %239 = vmatprep.subr.mxu0 0.0
  %240 = vmatpush1.msra.mxu0 %v207
  %241 = vmatprep.subr.mxu0 0.0
  %242 = vmatpush1.msra.mxu0 %v208
  %243 = vmatprep.subr.mxu0 0.0
  %244 = vmatpush1.msra.mxu0 %v209
  %245 = vmatprep.subr.mxu0 0.0
  %246 = vmatpush1.msra.mxu0 %v210
  %247 = vmatprep.subr.mxu0 0.0
  %248 = vmatpush1.msra.mxu0 %v211
  %249 = vmatprep.subr.mxu0 0.0
  %250 = vmatpush1.msra.mxu0 0.0
  %251 = vmatprep.subr.mxu0 0.0
  %252 = vmatpush1.msra.mxu0 0.0
  %253 = vmatprep.subr.mxu0 0.0
  %254 = vmatpush1.msra.mxu0 0.0
  %255 = vmatprep.subr.mxu0 0.0
  %256 = vmatpush1.msra.mxu0 0.0
  %257 = vmatprep.subr.mxu0 0.0
  %258 = vmatpush1.msra.mxu0 0.0
  %259 = vmatprep.subr.mxu0 0.0
  %260 = vmatpush1.msra.mxu0 0.0
  %261 = vmatprep.subr.mxu0 0.0
  %262 = vmatpush1.msra.mxu0 0.0
  %263 = vmatprep.subr.mxu0 0.0
  %264 = vmatpush1.msra.mxu0 0.0
  %265 = vmatprep.subr.mxu0 0.0
  %266 = vmatpush1.msra.mxu0 0.0
  %267 = vmatprep.subr.mxu0 0.0
  %268 = vmatpush1.msra.mxu0 0.0
  %269 = vmatprep.subr.mxu0 0.0
  %270 = vmatpush1.msra.mxu0 0.0
  %271 = vmatprep.subr.mxu0 0.0
  %272 = vmatpush1.msra.mxu0 0.0
  %273 = vmatprep.subr.mxu0 0.0
  %274 = vmatpush1.msra.mxu0 0.0
  %275 = vmatprep.subr.mxu0 0.0
  %276 = vmatpush1.msra.mxu0 0.0
  %277 = vmatprep.subr.mxu0 0.0
  %278 = vmatpush1.msra.mxu0 0.0
  %279 = vmatprep.subr.mxu0 0.0
  %280 = vmatpush1.msra.mxu0 0.0
  %281 = vmatprep.mubr.f32.mxu0 0.0
  %282 = vmatmul.mubr.f32.gmra.mrb[0].mxu0 %v195
  %v283 = vpop.f32.mrb[0].mxu0
  %v284 = vadd.f32 %v216, %v283
  %v285 = vpop.f32.mrb[0].mxu0
  %286 = vdwg.mxu0
  %v287 = vtanh.pop %v284
  %vm288 = vcmask 130048
  %289 = vst.msk [vmem:[%s2] sm:$0xff] %vm288, %v287
  // Predicated region
  $region10: #{net_forward.1} parent=0 // pred_check
    _
  $region11: #{net_forward.1} parent=0 // pred_check_branch
    %291 = sbr.rel (0) target = $region13
  $region12: #{net_forward.1} parent=0 // pred_region
    _
  $region13: #{net_forward.1} parent=0 // pred_fallthru
    _
  // Predicated region
  $region14: #{net_forward.1} parent=0 // pred_check
    _
  $region15: #{net_forward.1} parent=0 // pred_check_branch
    %293 = sbr.rel (0) target = $region17
  $region16: #{net_forward.1} parent=0 // pred_region
    _
  $region17: #{net_forward.1} parent=0 // pred_fallthru
    _

</llo_original>
